<compile_context>
chip_gen: v7x
topology: tpu7x:2x2x1
jax: 0.10.0
libtpu: 0.0.40
codegen_flags: <defaults>
</compile_context>

<pallas_src>
import functools

import jax
import jax.numpy as jnp
from jax.experimental import pallas as pl
from jax.experimental.pallas import tpu as pltpu


def _temporal_block_kernel(x_ref, w1_ref, b1_ref, w2_ref, b2_ref, *rest,
                           ks, dilation, L, has_downsample, fuse_taps):
    if has_downsample:
        wd_ref, bd_ref, o_ref = rest
    else:
        (o_ref,) = rest

    d = dilation
    p = d * (ks - 1)                       # causal left pad (== PyTorch padding, chomped right)

    x = x_ref[...]                         # (Cin, NB*L): channels on sublanes, batch*time on lanes
    _, NL = x.shape
    lane_aligned = (NL % 128) == 0

    # Within-sample time index of every lane, generated in-register (no HBM input / DMA stream).
    t_local = jax.lax.broadcasted_iota(jnp.int32, (1, NL), 1) % L

    # Per-tap shifts and masks, hoisted once per grid step and shared by conv1 and conv2.
    shifts = [p - k * d for k in range(ks)]
    masks = {s: t_local >= s for s in set(shifts) if s > 0}

    def shift_right_within_sample(v, s):
        """v shifted right by s lanes; lanes with within-sample time index < s become 0.

        Realises the causal (left) zero padding of the dilated conv directly on the
        batch-flattened lane axis.  The mask zeroes both the virtual pad lanes and the lanes
        that would otherwise see the previous sample's tail (or the circular wrap of roll).
        """
        if s == 0:
            return v
        if lane_aligned:
            # XLU lane rotation (free-ish slot); wrapped-in lanes are masked below.
            rolled = pltpu.roll(v, shift=s, axis=1)
        else:
            # Fallback for unaligned lane blocks (tiny shapes): static slice + concat.
            c, nl = v.shape
            rolled = jnp.concatenate(
                [jnp.zeros((c, s), v.dtype), v[:, : nl - s]], axis=-1)
        return jnp.where(masks[s], rolled, 0.0)

    def causal_dilated_conv(v, w_ref, b_ref):
        """ReLU(causal dilated conv1d(v) + b); f32 accumulation on the MXU."""
        if fuse_taps:
            # Stack the ks shifted windows on sublanes -> one (Cout, ks*Cin)@(ks*Cin, NL) matmul.
            win = jnp.concatenate(
                [shift_right_within_sample(v, s) for s in shifts], axis=0)
            acc = jnp.dot(w_ref[...], win, preferred_element_type=jnp.float32)
        else:
            # Per-tap matmuls: better at tiny Cin/Cout where sublane stacking costs more than
            # the extra MXU pushes it saves.
            acc = None
            for k, s in enumerate(shifts):
                part = jnp.dot(w_ref[k], shift_right_within_sample(v, s),
                               preferred_element_type=jnp.float32)
                acc = part if acc is None else acc + part
        return jnp.maximum(acc + b_ref[...], 0.0)          # bias add / ReLU stay in f32

    # conv1 -> chomp -> ReLU   (dropout1 = identity in eval mode)
    out1 = causal_dilated_conv(x, w1_ref, b1_ref)
    # conv2 -> chomp -> ReLU   (dropout2 = identity) — consumes out1 in-register, no scratch.
    out2 = causal_dilated_conv(out1.astype(x.dtype), w2_ref, b2_ref)

    # Residual branch: 1x1 conv if ni != nf, else identity (added in f32).
    if has_downsample:
        res = jnp.dot(wd_ref[...], x, preferred_element_type=jnp.float32) + bd_ref[...]
    else:
        res = x.astype(jnp.float32)

    o_ref[...] = jnp.maximum(out2 + res, 0.0).astype(o_ref.dtype)


def _vmem_capacity_bytes():
    try:
        return int(pltpu.get_tpu_info().vmem_capacity_bytes)
    except Exception:
        return 64 * 1024 * 1024            # conservative fallback (v7x per-core VMEM)


def _pick_batch_tile(N, L, max_lane_block=2048):
    """Number of batch samples folded into the lane axis of one grid step.

    Invariant (correct + dense stores): the block either covers the full N*L lane extent or has
    a lane count that is a multiple of 128.  Within that, prefer blocks <= max_lane_block lanes
    (near the 64-vreg live-value budget and inside v7x's 64 MiB VMEM) and >=2 grid steps
    (input/output pipelining and dual-TensorCore sharding on v7x).
    """
    divisors = [d for d in range(N, 0, -1) if N % d == 0]          # descending
    if (L % 128) == 0:
        fitting = [d for d in divisors if d * L <= max_lane_block]
        if not fitting:
            # TODO(synk): time-tile grid axis with a p-lane halo for very long sequences.
            return 1
        nb = fitting[0]
        if nb == N and N > 1:
            nb = divisors[1]               # largest proper divisor -> guarantees >=2 grid steps
        return nb
    # Unaligned per-sample length: aligned multi-step blocks only exist if (nb*L) % 128 == 0.
    for d in divisors[1:]:
        if (d * L) % 128 == 0 and d * L <= max_lane_block:
            return d
    # TODO(synk): time-tile with halo; for now fall back to one full-lane block (always correct).
    return N


def temporal_block_forward(x, w1, b1, w2, b2, wd=None, bd=None, *,
                           stride=1, dilation=1, padding=None,
                           batch_tile=None, max_lane_block=2048,
                           compute_dtype=jnp.float32, fuse_taps=None):
    """x: (N, ni, L) f32.  Conv weights follow PyTorch Conv1d layout (Cout, Cin, ks).

    compute_dtype: dtype fed to the MXU (f32 or bf16); accumulation, bias/ReLU, residual add and
                   the output stay f32.
    fuse_taps:     None = auto (stack the ks taps into one matmul when ks*max(ni, nf) >= 64).
    """
    N, ni, L = x.shape
    nf, ni_w, ks = w1.shape
    assert ni_w == ni
    d = dilation
    p = d * (ks - 1) if padding is None else padding
    # TODO(synk): stride != 1 unsupported (the residual add would shape-mismatch in PyTorch too).
    assert stride == 1, "stride != 1 unsupported"
    assert p == d * (ks - 1), "TemporalBlock requires padding == dilation*(ks-1)"
    has_downsample = wd is not None
    if not has_downsample:
        assert ni == nf, "identity residual requires ni == nf"
    if fuse_taps is None:
        fuse_taps = ks * max(ni, nf) >= 64

    NB = batch_tile if batch_tile is not None else _pick_batch_tile(N, L, max_lane_block)
    assert N % NB == 0 and (NB == N or (NB * L) % 128 == 0)
    NL = NB * L

    cdt = jnp.dtype(compute_dtype)

    # ---- one-time host-side layout prep (layout only; no padded / duplicated data) -----------
    # x: (N, C, L) -> channel-major flat (C, N*L): batch folded into the lane axis.
    xf = jnp.transpose(x, (1, 0, 2)).reshape(ni, N * L).astype(cdt)
    if fuse_taps:
        # (Cout, Cin, ks) -> (Cout, ks*Cin), k-major, matching the sublane-stacked windows.
        w1r = jnp.transpose(w1, (0, 2, 1)).reshape(nf, ks * ni).astype(cdt)
        w2r = jnp.transpose(w2, (0, 2, 1)).reshape(nf, ks * nf).astype(cdt)
        w1_spec = pl.BlockSpec((nf, ks * ni), lambda i: (0, 0))
        w2_spec = pl.BlockSpec((nf, ks * nf), lambda i: (0, 0))
    else:
        # (Cout, Cin, ks) -> tap-major (ks, Cout, Cin): per-tap slices are leading-dim slices.
        w1r = jnp.transpose(w1, (2, 0, 1)).astype(cdt)
        w2r = jnp.transpose(w2, (2, 0, 1)).astype(cdt)
        w1_spec = pl.BlockSpec((ks, nf, ni), lambda i: (0, 0, 0))
        w2_spec = pl.BlockSpec((ks, nf, nf), lambda i: (0, 0, 0))
    b1c = b1.reshape(nf, 1).astype(jnp.float32)
    b2c = b2.reshape(nf, 1).astype(jnp.float32)

    kernel = functools.partial(_temporal_block_kernel, ks=ks, dilation=d, L=L,
                               has_downsample=has_downsample, fuse_taps=fuse_taps)

    in_specs = [
        pl.BlockSpec((ni, NL), lambda i: (0, i)),          # x, batch-flattened lanes
        w1_spec,
        pl.BlockSpec((nf, 1), lambda i: (0, 0)),           # b1
        w2_spec,
        pl.BlockSpec((nf, 1), lambda i: (0, 0)),           # b2
    ]
    args = [xf, w1r, b1c, w2r, b2c]
    weight_bytes = (w1r.size * w1r.dtype.itemsize + w2r.size * w2r.dtype.itemsize
                    + (b1c.size + b2c.size) * 4)
    if has_downsample:
        wdr = wd.reshape(nf, ni).astype(cdt)
        bdr = bd.reshape(nf, 1).astype(jnp.float32)
        in_specs += [pl.BlockSpec((nf, ni), lambda i: (0, 0)),   # downsample weight (1x1)
                     pl.BlockSpec((nf, 1), lambda i: (0, 0))]    # downsample bias
        args += [wdr, bdr]
        weight_bytes += wdr.size * wdr.dtype.itemsize + bdr.size * 4

    # ---- per-generation VMEM budgeting --------------------------------------------------------
    io_block_bytes = ni * NL * cdt.itemsize + nf * NL * 4          # x block (cdt) + out block (f32)
    est_vmem = 2 * io_block_bytes + 2 * weight_bytes + (1 << 20)   # dbl-buffered IO + weights + slack
    vmem_cap = _vmem_capacity_bytes()
    assert est_vmem < vmem_cap, (
        f"block too large for VMEM ({est_vmem} B vs {vmem_cap} B): "
        "lower max_lane_block / batch_tile")
    vmem_limit = int(min(vmem_cap * 3 // 4, max(32 * 1024 * 1024, 2 * est_vmem)))

    grid_spec = pltpu.PrefetchScalarGridSpec(
        num_scalar_prefetch=0,
        grid=(N // NB,),
        in_specs=in_specs,
        out_specs=pl.BlockSpec((nf, NL), lambda i: (0, i)),
    )

    y_flat = pl.pallas_call(
        kernel,
        out_shape=jax.ShapeDtypeStruct((nf, N * L), jnp.float32),
        grid_spec=grid_spec,
        compiler_params=pltpu.CompilerParams(
            # Batch tiles are independent.  TODO(synk): explicit CORE_PARALLEL / core_map for
            # guaranteed dual-TensorCore sharding on v7x.
            dimension_semantics=("parallel",),
            vmem_limit_bytes=vmem_limit,
        ),
    )(*args)

    return jnp.transpose(y_flat.reshape(nf, N, L), (1, 0, 2))


def _reference(x, w1, b1, w2, b2, wd, bd, *, dilation, padding):
    """Pure-JAX reference mirroring the PyTorch module (eval mode)."""
    L = x.shape[-1]

    def conv1d(inp, w, b, d, p):
        y = jax.lax.conv_general_dilated(
            inp, w, window_strides=(1,), padding=[(p, p)],
            rhs_dilation=(d,), dimension_numbers=("NCH", "OIH", "NCH"))
        return y + b[None, :, None]

    out = jnp.maximum(conv1d(x, w1, b1, dilation, padding)[:, :, :L], 0.0)
    out = jnp.maximum(conv1d(out, w2, b2, dilation, padding)[:, :, :L], 0.0)
    res = x if wd is None else conv1d(x, wd, bd, 1, 0)
    return jnp.maximum(out + res, 0.0)


if __name__ == "__main__":
    # TemporalBlock(ni, nf, ks=3, stride=1, dilation=2, padding=(ks-1)*dilation, dropout=0.0)
    ks, stride, dilation = 3, 1, 2
    padding = (ks - 1) * dilation

    key = jax.random.PRNGKey(0)
    kx, kw1, kb1, kw2, kb2, kwd, kbd = jax.random.split(key, 7)

    # ---- Path 1: ni != nf (1x1 downsample residual), lane-aligned L -> roll path, grid=(2,)
    N, ni, nf, L = 4, 4, 8, 128
    x = jax.random.normal(kx, (N, ni, L), dtype=jnp.float32)
    # conv weights ~ N(0, 0.01) as in init_weights(); biases: small deterministic values.
    w1 = 0.01 * jax.random.normal(kw1, (nf, ni, ks), dtype=jnp.float32)
    b1 = 0.05 * jax.random.normal(kb1, (nf,), dtype=jnp.float32)
    w2 = 0.01 * jax.random.normal(kw2, (nf, nf, ks), dtype=jnp.float32)
    b2 = 0.05 * jax.random.normal(kb2, (nf,), dtype=jnp.float32)
    wd = 0.01 * jax.random.normal(kwd, (nf, ni, 1), dtype=jnp.float32)
    bd = 0.05 * jax.random.normal(kbd, (nf,), dtype=jnp.float32)

    out = jax.block_until_ready(temporal_block_forward(
        x, w1, b1, w2, b2, wd, bd, stride=stride, dilation=dilation, padding=padding))
    ref = _reference(x, w1, b1, w2, b2, wd, bd, dilation=dilation, padding=padding)
    assert out.shape == (N, nf, L)
    assert jnp.allclose(out, ref, atol=1e-4, rtol=1e-4), "mismatch (downsample / roll path)"

    # ---- Path 2: ni == nf (identity residual), unaligned L -> concat fallback, full-batch block
    N2, L2 = 2, 16
    x2 = jax.random.normal(kx, (N2, nf, L2), dtype=jnp.float32)
    w1b = 0.01 * jax.random.normal(kw1, (nf, nf, ks), dtype=jnp.float32)
    out2 = jax.block_until_ready(temporal_block_forward(
        x2, w1b, b1, w2, b2, None, None, stride=stride, dilation=dilation, padding=padding))
    ref2 = _reference(x2, w1b, b1, w2, b2, None, None, dilation=dilation, padding=padding)
    assert jnp.allclose(out2, ref2, atol=1e-4, rtol=1e-4), "mismatch (identity / concat path)"

    # ---- Path 3: bf16 IO / bf16 MXU inputs + fused-tap matmul (f32 accumulation, f32 output)
    out3 = jax.block_until_ready(temporal_block_forward(
        x, w1, b1, w2, b2, wd, bd, stride=stride, dilation=dilation, padding=padding,
        compute_dtype=jnp.bfloat16, fuse_taps=True))
    assert out3.shape == (N, nf, L)
    assert jnp.allclose(out3, ref, atol=2e-2, rtol=2e-2), "mismatch (bf16 / fused-tap path)"

    print("KERNEL_OK")
</pallas_src>

<mosaic_0001>
module attributes {stable_mosaic.version = 11 : i64} {
  func.func @_temporal_block_kernel(%arg0: i32, %arg1: memref<4x256xf32, #tpu.memory_space<vmem>>, %arg2: memref<3x8x4xf32, #tpu.memory_space<vmem>>, %arg3: memref<8x1xf32, #tpu.memory_space<vmem>>, %arg4: memref<3x8x8xf32, #tpu.memory_space<vmem>>, %arg5: memref<8x1xf32, #tpu.memory_space<vmem>>, %arg6: memref<8x4xf32, #tpu.memory_space<vmem>>, %arg7: memref<8x1xf32, #tpu.memory_space<vmem>>, %arg8: memref<8x256xf32, #tpu.memory_space<vmem>>) attributes {dimension_semantics = [#tpu.dimension_semantics<parallel>], iteration_bounds = array<i64: 2>, scalar_prefetch = 0 : i64, scratch_operands = 0 : i64, tpu.core_type = #tpu.core_type<tc>, window_params = [{transform_indices = @transform_0, window_bounds = array<i64: 4, 256>}, {pipeline_mode = #tpu.pipeline_mode<synchronous>, transform_indices = @transform_1, window_bounds = array<i64: 3, 8, 4>}, {pipeline_mode = #tpu.pipeline_mode<synchronous>, transform_indices = @transform_2, window_bounds = array<i64: 8, 1>}, {pipeline_mode = #tpu.pipeline_mode<synchronous>, transform_indices = @transform_3, window_bounds = array<i64: 3, 8, 8>}, {pipeline_mode = #tpu.pipeline_mode<synchronous>, transform_indices = @transform_4, window_bounds = array<i64: 8, 1>}, {pipeline_mode = #tpu.pipeline_mode<synchronous>, transform_indices = @transform_5, window_bounds = array<i64: 8, 4>}, {pipeline_mode = #tpu.pipeline_mode<synchronous>, transform_indices = @transform_6, window_bounds = array<i64: 8, 1>}, {transform_indices = @transform_7, window_bounds = array<i64: 8, 256>}]} {
    %c0 = arith.constant 0 : index
    %c0_0 = arith.constant 0 : index
    %0 = vector.load %arg1[%c0, %c0_0] : memref<4x256xf32, #tpu.memory_space<vmem>>, vector<4x256xf32>
    %1 = tpu.iota {dimensions = array<i32: 1>} : vector<1x256xi32>
    %c128_i32 = arith.constant 128 : i32
    %c0_i32 = arith.constant 0 : i32
    %2 = arith.cmpi eq, %c128_i32, %c0_i32 : i32
    %c1_i32 = arith.constant 1 : i32
    %3 = arith.select %2, %c1_i32, %c128_i32 : i32
    %4 = vector.broadcast %3 : i32 to vector<1x256xi32>
    %5 = arith.remsi %1, %4 : vector<1x256xi32>
    %c0_i32_1 = arith.constant 0 : i32
    %6 = vector.broadcast %c0_i32_1 : i32 to vector<1x256xi32>
    %7 = arith.cmpi ne, %5, %6 : vector<1x256xi32>
    %c0_i32_2 = arith.constant 0 : i32
    %8 = vector.broadcast %c0_i32_2 : i32 to vector<1x256xi32>
    %9 = arith.cmpi slt, %5, %8 : vector<1x256xi32>
    %c0_i32_3 = arith.constant 0 : i32
    %10 = arith.cmpi slt, %3, %c0_i32_3 : i32
    %11 = vector.broadcast %10 : i1 to vector<1x256xi1>
    %12 = vector.broadcast %11 : vector<1x256xi1> to vector<1x256xi1>
    %13 = arith.xori %9, %12 : vector<1x256xi1>
    %14 = arith.andi %13, %7 : vector<1x256xi1>
    %15 = vector.broadcast %3 : i32 to vector<1x256xi32>
    %16 = arith.addi %5, %15 : vector<1x256xi32>
    %17 = arith.select %14, %16, %5 : vector<1x256xi1>, vector<1x256xi32>
    %c2_i32 = arith.constant 2 : i32
    %18 = vector.broadcast %c2_i32 : i32 to vector<1x256xi32>
    %19 = arith.cmpi sge, %17, %18 : vector<1x256xi32>
    %c4_i32 = arith.constant 4 : i32
    %20 = vector.broadcast %c4_i32 : i32 to vector<1x256xi32>
    %21 = arith.cmpi sge, %17, %20 : vector<1x256xi32>
    %c0_4 = arith.constant 0 : index
    %c0_5 = arith.constant 0 : index
    %c0_6 = arith.constant 0 : index
    %22 = vector.load %arg2[%c0_4, %c0_5, %c0_6] : memref<3x8x4xf32, #tpu.memory_space<vmem>>, vector<1x8x4xf32>
    %23 = vector.shape_cast %22 : vector<1x8x4xf32> to vector<8x4xf32>
    %c4_i32_7 = arith.constant 4 : i32
    %24 = tpu.dynamic_rotate %0 by %c4_i32_7 dim 1 : vector<4x256xf32>, i32 -> vector<4x256xf32>
    %cst = arith.constant 0.000000e+00 : f32
    %25 = vector.shape_cast %21 : vector<1x256xi1> to vector<1x256xi1>
    %26 = vector.broadcast %25 : vector<1x256xi1> to vector<4x256xi1>
    %27 = vector.broadcast %cst : f32 to vector<4x256xf32>
    %28 = arith.select %26, %24, %27 : vector<4x256xi1>, vector<4x256xf32>
    %cst_8 = arith.constant dense<0.000000e+00> : vector<8x256xf32>
    %29 = tpu.matmul %23, %28, %cst_8 {dimension_numbers = #tpu.dot_dimension_numbers<[1], [0], [0], [1], [0, 0, 1, 1], [], []>} : vector<8x4xf32>, vector<4x256xf32>, vector<8x256xf32> -> vector<8x256xf32>
    %c1 = arith.constant 1 : index
    %c0_9 = arith.constant 0 : index
    %c0_10 = arith.constant 0 : index
    %30 = vector.load %arg2[%c1, %c0_9, %c0_10] : memref<3x8x4xf32, #tpu.memory_space<vmem>>, vector<1x8x4xf32>
    %31 = vector.shape_cast %30 : vector<1x8x4xf32> to vector<8x4xf32>
    %c2_i32_11 = arith.constant 2 : i32
    %32 = tpu.dynamic_rotate %0 by %c2_i32_11 dim 1 : vector<4x256xf32>, i32 -> vector<4x256xf32>
    %cst_12 = arith.constant 0.000000e+00 : f32
    %33 = vector.shape_cast %19 : vector<1x256xi1> to vector<1x256xi1>
    %34 = vector.broadcast %33 : vector<1x256xi1> to vector<4x256xi1>
    %35 = vector.broadcast %cst_12 : f32 to vector<4x256xf32>
    %36 = arith.select %34, %32, %35 : vector<4x256xi1>, vector<4x256xf32>
    %cst_13 = arith.constant dense<0.000000e+00> : vector<8x256xf32>
    %37 = tpu.matmul %31, %36, %cst_13 {dimension_numbers = #tpu.dot_dimension_numbers<[1], [0], [0], [1], [0, 0, 1, 1], [], []>} : vector<8x4xf32>, vector<4x256xf32>, vector<8x256xf32> -> vector<8x256xf32>
    %38 = arith.addf %29, %37 : vector<8x256xf32>
    %c2 = arith.constant 2 : index
    %c0_14 = arith.constant 0 : index
    %c0_15 = arith.constant 0 : index
    %39 = vector.load %arg2[%c2, %c0_14, %c0_15] : memref<3x8x4xf32, #tpu.memory_space<vmem>>, vector<1x8x4xf32>
    %40 = vector.shape_cast %39 : vector<1x8x4xf32> to vector<8x4xf32>
    %cst_16 = arith.constant dense<0.000000e+00> : vector<8x256xf32>
    %41 = tpu.matmul %40, %0, %cst_16 {dimension_numbers = #tpu.dot_dimension_numbers<[1], [0], [0], [1], [0, 0, 1, 1], [], []>} : vector<8x4xf32>, vector<4x256xf32>, vector<8x256xf32> -> vector<8x256xf32>
    %42 = arith.addf %38, %41 : vector<8x256xf32>
    %c0_17 = arith.constant 0 : index
    %c0_18 = arith.constant 0 : index
    %43 = vector.load %arg3[%c0_17, %c0_18] : memref<8x1xf32, #tpu.memory_space<vmem>>, vector<8x1xf32>
    %44 = vector.broadcast %43 : vector<8x1xf32> to vector<8x256xf32>
    %45 = arith.addf %42, %44 : vector<8x256xf32>
    %cst_19 = arith.constant 0.000000e+00 : f32
    %46 = vector.broadcast %cst_19 : f32 to vector<8x256xf32>
    %47 = arith.maximumf %45, %46 : vector<8x256xf32>
    %c0_20 = arith.constant 0 : index
    %c0_21 = arith.constant 0 : index
    %c0_22 = arith.constant 0 : index
    %48 = vector.load %arg4[%c0_20, %c0_21, %c0_22] : memref<3x8x8xf32, #tpu.memory_space<vmem>>, vector<1x8x8xf32>
    %49 = vector.shape_cast %48 : vector<1x8x8xf32> to vector<8x8xf32>
    %c4_i32_23 = arith.constant 4 : i32
    %50 = tpu.dynamic_rotate %47 by %c4_i32_23 dim 1 : vector<8x256xf32>, i32 -> vector<8x256xf32>
    %cst_24 = arith.constant 0.000000e+00 : f32
    %51 = vector.shape_cast %21 : vector<1x256xi1> to vector<1x256xi1>
    %52 = vector.broadcast %51 : vector<1x256xi1> to vector<8x256xi1>
    %53 = vector.broadcast %cst_24 : f32 to vector<8x256xf32>
    %54 = arith.select %52, %50, %53 : vector<8x256xi1>, vector<8x256xf32>
    %cst_25 = arith.constant dense<0.000000e+00> : vector<8x256xf32>
    %55 = tpu.matmul %49, %54, %cst_25 {dimension_numbers = #tpu.dot_dimension_numbers<[1], [0], [0], [1], [0, 0, 1, 1], [], []>} : vector<8x8xf32>, vector<8x256xf32>, vector<8x256xf32> -> vector<8x256xf32>
    %c1_26 = arith.constant 1 : index
    %c0_27 = arith.constant 0 : index
    %c0_28 = arith.constant 0 : index
    %56 = vector.load %arg4[%c1_26, %c0_27, %c0_28] : memref<3x8x8xf32, #tpu.memory_space<vmem>>, vector<1x8x8xf32>
    %57 = vector.shape_cast %56 : vector<1x8x8xf32> to vector<8x8xf32>
    %c2_i32_29 = arith.constant 2 : i32
    %58 = tpu.dynamic_rotate %47 by %c2_i32_29 dim 1 : vector<8x256xf32>, i32 -> vector<8x256xf32>
    %cst_30 = arith.constant 0.000000e+00 : f32
    %59 = vector.shape_cast %19 : vector<1x256xi1> to vector<1x256xi1>
    %60 = vector.broadcast %59 : vector<1x256xi1> to vector<8x256xi1>
    %61 = vector.broadcast %cst_30 : f32 to vector<8x256xf32>
    %62 = arith.select %60, %58, %61 : vector<8x256xi1>, vector<8x256xf32>
    %cst_31 = arith.constant dense<0.000000e+00> : vector<8x256xf32>
    %63 = tpu.matmul %57, %62, %cst_31 {dimension_numbers = #tpu.dot_dimension_numbers<[1], [0], [0], [1], [0, 0, 1, 1], [], []>} : vector<8x8xf32>, vector<8x256xf32>, vector<8x256xf32> -> vector<8x256xf32>
    %64 = arith.addf %55, %63 : vector<8x256xf32>
    %c2_32 = arith.constant 2 : index
    %c0_33 = arith.constant 0 : index
    %c0_34 = arith.constant 0 : index
    %65 = vector.load %arg4[%c2_32, %c0_33, %c0_34] : memref<3x8x8xf32, #tpu.memory_space<vmem>>, vector<1x8x8xf32>
    %66 = vector.shape_cast %65 : vector<1x8x8xf32> to vector<8x8xf32>
    %cst_35 = arith.constant dense<0.000000e+00> : vector<8x256xf32>
    %67 = tpu.matmul %66, %47, %cst_35 {dimension_numbers = #tpu.dot_dimension_numbers<[1], [0], [0], [1], [0, 0, 1, 1], [], []>} : vector<8x8xf32>, vector<8x256xf32>, vector<8x256xf32> -> vector<8x256xf32>
    %68 = arith.addf %64, %67 : vector<8x256xf32>
    %c0_36 = arith.constant 0 : index
    %c0_37 = arith.constant 0 : index
    %69 = vector.load %arg5[%c0_36, %c0_37] : memref<8x1xf32, #tpu.memory_space<vmem>>, vector<8x1xf32>
    %70 = vector.broadcast %69 : vector<8x1xf32> to vector<8x256xf32>
    %71 = arith.addf %68, %70 : vector<8x256xf32>
    %cst_38 = arith.constant 0.000000e+00 : f32
    %72 = vector.broadcast %cst_38 : f32 to vector<8x256xf32>
    %73 = arith.maximumf %71, %72 : vector<8x256xf32>
    %c0_39 = arith.constant 0 : index
    %c0_40 = arith.constant 0 : index
    %74 = vector.load %arg6[%c0_39, %c0_40] : memref<8x4xf32, #tpu.memory_space<vmem>>, vector<8x4xf32>
    %cst_41 = arith.constant dense<0.000000e+00> : vector<8x256xf32>
    %75 = tpu.matmul %74, %0, %cst_41 {dimension_numbers = #tpu.dot_dimension_numbers<[1], [0], [0], [1], [0, 0, 1, 1], [], []>} : vector<8x4xf32>, vector<4x256xf32>, vector<8x256xf32> -> vector<8x256xf32>
    %c0_42 = arith.constant 0 : index
    %c0_43 = arith.constant 0 : index
    %76 = vector.load %arg7[%c0_42, %c0_43] : memref<8x1xf32, #tpu.memory_space<vmem>>, vector<8x1xf32>
    %77 = vector.broadcast %76 : vector<8x1xf32> to vector<8x256xf32>
    %78 = arith.addf %75, %77 : vector<8x256xf32>
    %79 = arith.addf %73, %78 : vector<8x256xf32>
    %cst_44 = arith.constant 0.000000e+00 : f32
    %80 = vector.broadcast %cst_44 : f32 to vector<8x256xf32>
    %81 = arith.maximumf %79, %80 : vector<8x256xf32>
    %c0_45 = arith.constant 0 : index
    %c0_46 = arith.constant 0 : index
    %82 = vector.load %arg8[%c0_45, %c0_46] : memref<8x256xf32, #tpu.memory_space<vmem>>, vector<8x256xf32>
    tpu.vector_store %arg8[%c0_45, %c0_46], %81 {strides = array<i32>} : memref<8x256xf32, #tpu.memory_space<vmem>>, vector<8x256xf32>,
    return
  }
  func.func @transform_0(%arg0: i32) -> (i32, i32) {
    %c0_i32 = arith.constant 0 : i32
    %c0_i32_0 = arith.constant 0 : i32
    return %c0_i32, %arg0 : i32, i32
  }
  func.func @transform_1(%arg0: i32) -> (i32, i32, i32) {
    %c0_i32 = arith.constant 0 : i32
    %c0_i32_0 = arith.constant 0 : i32
    %c0_i32_1 = arith.constant 0 : i32
    %c0_i32_2 = arith.constant 0 : i32
    return %c0_i32, %c0_i32_0, %c0_i32_1 : i32, i32, i32
  }
  func.func @transform_2(%arg0: i32) -> (i32, i32) {
    %c0_i32 = arith.constant 0 : i32
    %c0_i32_0 = arith.constant 0 : i32
    %c0_i32_1 = arith.constant 0 : i32
    return %c0_i32, %c0_i32_0 : i32, i32
  }
  func.func @transform_3(%arg0: i32) -> (i32, i32, i32) {
    %c0_i32 = arith.constant 0 : i32
    %c0_i32_0 = arith.constant 0 : i32
    %c0_i32_1 = arith.constant 0 : i32
    %c0_i32_2 = arith.constant 0 : i32
    return %c0_i32, %c0_i32_0, %c0_i32_1 : i32, i32, i32
  }
  func.func @transform_4(%arg0: i32) -> (i32, i32) {
    %c0_i32 = arith.constant 0 : i32
    %c0_i32_0 = arith.constant 0 : i32
    %c0_i32_1 = arith.constant 0 : i32
    return %c0_i32, %c0_i32_0 : i32, i32
  }
  func.func @transform_5(%arg0: i32) -> (i32, i32) {
    %c0_i32 = arith.constant 0 : i32
    %c0_i32_0 = arith.constant 0 : i32
    %c0_i32_1 = arith.constant 0 : i32
    return %c0_i32, %c0_i32_0 : i32, i32
  }
  func.func @transform_6(%arg0: i32) -> (i32, i32) {
    %c0_i32 = arith.constant 0 : i32
    %c0_i32_0 = arith.constant 0 : i32
    %c0_i32_1 = arith.constant 0 : i32
    return %c0_i32, %c0_i32_0 : i32, i32
  }
  func.func @transform_7(%arg0: i32) -> (i32, i32) {
    %c0_i32 = arith.constant 0 : i32
    %c0_i32_0 = arith.constant 0 : i32
    return %c0_i32, %arg0 : i32, i32
  }
}

</mosaic_0001>

<llo_original>
// kernel: tpu_custom_call.1
$region0: #{tpu_custom_call.1}
  #allocation0 [shape = 'u32[]', space=smem, size = 0x4, offset = 0x4, fixed_abs, tag = 'smem constant byte address 0x4 - core index']
  #allocation1 [shape = 'u32[144,128]{1,0:T(1,128)}', space=vmem, size = 0x12000, scoped, tag = 'internal scratch']
  %s0 = inlined_call_operand.vmem [shape: f32[4,512], index: 0, kind: input, shape index: {}]
  %s1 = inlined_call_operand.vmem [shape: f32[3,8,4], index: 1, kind: input, shape index: {}]
  %s2 = inlined_call_operand.vmem [shape: f32[8,1], index: 2, kind: input, shape index: {}]
  %s3 = inlined_call_operand.vmem [shape: f32[3,8,8], index: 3, kind: input, shape index: {}]
  %s4 = inlined_call_operand.vmem [shape: f32[8,1], index: 4, kind: input, shape index: {}]
  %s5 = inlined_call_operand.vmem [shape: f32[8,4], index: 5, kind: input, shape index: {}]
  %s6 = inlined_call_operand.vmem [shape: f32[8,1], index: 6, kind: input, shape index: {}]
  %s7 = inlined_call_operand.hbm [shape: f32[8,512], index: 7, kind: output, shape index: {}]
  %s8 = sld [smem:[#allocation0]]
  $region61: #{tpu_custom_call.1} parent=0
    _
  %s10 = ssub.s32 1, %s8
  %s11 = scalar_select 0, %s10, %s8
  $region1: #{tpu_custom_call.1} parent=0
    #allocation2 [shape = 'u8[16384]{0}', space=vmem, size = 0x4000, scoped, tag = 'output window, operand 0']
    #allocation3 [shape = 's32[2]{0}', space=sflag, size = 0x8, scoped, tag = 'scoped memory for tpu_custom_call.1']
    %12 = vsyncpa [#allocation3], 0
    %s13 = scalar_lea.sflag [#allocation3], 1
    %14 = vsyncpa %s13, 0
    loop: start=0, step=1, limit=4
    $region2: #{tpu_custom_call.1} parent=1 // loop_pre_header
      _
    $region3: #{tpu_custom_call.1} parent=1 // loop_header
      %s16 = sphi 0, %s20
      %p17 = scmp.ge.s32.totalorder %s16, 4
      %s26 = sphi 0, %s28
      %s29 = sphi 0, %s26
      %s30 = sphi 0, %s29
      %s46 = sphi 0, %s30
      %s50 = sphi 0, %s50
      %s52 = sphi 0, %s50
      %s53 = sphi 0, %s52
      %s67 = sphi 0, %s53
      %s71 = sphi 0, %s71
      %s73 = sphi 0, %s71
      %s74 = sphi 0, %s73
      %s88 = sphi 0, %s74
      %s92 = sphi 0, %s92
      %s94 = sphi 0, %s92
      %s95 = sphi 0, %s94
      %s109 = sphi 0, %s95
      %s113 = sphi 0, %s113
      %s115 = sphi 0, %s113
      %s116 = sphi 0, %s115
      %s130 = sphi 0, %s116
      %s134 = sphi 0, %s134
      %s136 = sphi 0, %s134
      %s137 = sphi 0, %s136
      %s151 = sphi 0, %s137
      %s155 = sphi 0, %s155
      %s157 = sphi 0, %s155
      %s158 = sphi 0, %s157
      %s172 = sphi 0, %s158
      %s178 = sphi 0, %s180
      %s181 = sphi 0, %s178
      %s182 = sphi 0, %s181
      %s198 = sphi 0, %s182
    $region4: #{tpu_custom_call.1} parent=1 // loop_header_branch
      %19 = sbr.rel (%p17) target = $region8
    $region5: #{tpu_custom_call.1} parent=1 // loop_body
      %s21 = ssub.s32 %s16, 1
      %s22 = ssub.s32 %s16, 2
      %s23 = sadd.s32 %s16, 1
      %s24 = ssub.s32 %s16, %s23
      %p25 = scmp.eq.s32.totalorder %s24, 0
      %s27 = sadd.s32 %s26, 1
      %s28 = scalar_select %p25, %s26, %s27
      %p31 = pneg %p25
      %p32 = scmp.eq.s32.totalorder %s16, 1
      %p33 = por %p31, %p32
      %p34 = scmp.ne.s32.totalorder %s26, %s29
      %p35 = scmp.eq.s32.totalorder %s16, 0
      %p36 = por %p34, %p35
      %p37 = scmp.ne.s32.totalorder %s26, %s29
      %p38 = scmp.eq.s32.totalorder %s21, 1
      %p39 = por %p37, %p38
      %p40 = scmp.ne.s32.totalorder %s29, %s30
      %p41 = scmp.eq.s32.totalorder %s21, 0
      %p42 = por %p40, %p41
      %p43 = scmp.ne.s32.totalorder %s29, %s30
      %p44 = scmp.eq.s32.totalorder %s22, 1
      %p45 = por %p43, %p44
      %p47 = scmp.ne.s32.totalorder %s30, %s46
      %p48 = scmp.eq.s32.totalorder %s22, 0
      %p49 = por %p47, %p48
      %s51 = sadd.s32 %s50, 1
      %p54 = scmp.eq.s32.totalorder %s16, 1
      %p55 = scmp.ne.s32.totalorder %s50, %s52
      %p56 = scmp.eq.s32.totalorder %s16, 0
      %p57 = por %p55, %p56
      %p58 = scmp.ne.s32.totalorder %s50, %s52
      %p59 = scmp.eq.s32.totalorder %s21, 1
      %p60 = por %p58, %p59
      %p61 = scmp.ne.s32.totalorder %s52, %s53
      %p62 = scmp.eq.s32.totalorder %s21, 0
      %p63 = por %p61, %p62
      %p64 = scmp.ne.s32.totalorder %s52, %s53
      %p65 = scmp.eq.s32.totalorder %s22, 1
      %p66 = por %p64, %p65
      %p68 = scmp.ne.s32.totalorder %s53, %s67
      %p69 = scmp.eq.s32.totalorder %s22, 0
      %p70 = por %p68, %p69
      %s72 = sadd.s32 %s71, 1
      %p75 = scmp.eq.s32.totalorder %s16, 1
      %p76 = scmp.ne.s32.totalorder %s71, %s73
      %p77 = scmp.eq.s32.totalorder %s16, 0
      %p78 = por %p76, %p77
      %p79 = scmp.ne.s32.totalorder %s71, %s73
      %p80 = scmp.eq.s32.totalorder %s21, 1
      %p81 = por %p79, %p80
      %p82 = scmp.ne.s32.totalorder %s73, %s74
      %p83 = scmp.eq.s32.totalorder %s21, 0
      %p84 = por %p82, %p83
      %p85 = scmp.ne.s32.totalorder %s73, %s74
      %p86 = scmp.eq.s32.totalorder %s22, 1
      %p87 = por %p85, %p86
      %p89 = scmp.ne.s32.totalorder %s74, %s88
      %p90 = scmp.eq.s32.totalorder %s22, 0
      %p91 = por %p89, %p90
      %s93 = sadd.s32 %s92, 1
      %p96 = scmp.eq.s32.totalorder %s16, 1
      %p97 = scmp.ne.s32.totalorder %s92, %s94
      %p98 = scmp.eq.s32.totalorder %s16, 0
      %p99 = por %p97, %p98
      %p100 = scmp.ne.s32.totalorder %s92, %s94
      %p101 = scmp.eq.s32.totalorder %s21, 1
      %p102 = por %p100, %p101
      %p103 = scmp.ne.s32.totalorder %s94, %s95
      %p104 = scmp.eq.s32.totalorder %s21, 0
      %p105 = por %p103, %p104
      %p106 = scmp.ne.s32.totalorder %s94, %s95
      %p107 = scmp.eq.s32.totalorder %s22, 1
      %p108 = por %p106, %p107
      %p110 = scmp.ne.s32.totalorder %s95, %s109
      %p111 = scmp.eq.s32.totalorder %s22, 0
      %p112 = por %p110, %p111
      %s114 = sadd.s32 %s113, 1
      %p117 = scmp.eq.s32.totalorder %s16, 1
      %p118 = scmp.ne.s32.totalorder %s113, %s115
      %p119 = scmp.eq.s32.totalorder %s16, 0
      %p120 = por %p118, %p119
      %p121 = scmp.ne.s32.totalorder %s113, %s115
      %p122 = scmp.eq.s32.totalorder %s21, 1
      %p123 = por %p121, %p122
      %p124 = scmp.ne.s32.totalorder %s115, %s116
      %p125 = scmp.eq.s32.totalorder %s21, 0
      %p126 = por %p124, %p125
      %p127 = scmp.ne.s32.totalorder %s115, %s116
      %p128 = scmp.eq.s32.totalorder %s22, 1
      %p129 = por %p127, %p128
      %p131 = scmp.ne.s32.totalorder %s116, %s130
      %p132 = scmp.eq.s32.totalorder %s22, 0
      %p133 = por %p131, %p132
      %s135 = sadd.s32 %s134, 1
      %p138 = scmp.eq.s32.totalorder %s16, 1
      %p139 = scmp.ne.s32.totalorder %s134, %s136
      %p140 = scmp.eq.s32.totalorder %s16, 0
      %p141 = por %p139, %p140
      %p142 = scmp.ne.s32.totalorder %s134, %s136
      %p143 = scmp.eq.s32.totalorder %s21, 1
      %p144 = por %p142, %p143
      %p145 = scmp.ne.s32.totalorder %s136, %s137
      %p146 = scmp.eq.s32.totalorder %s21, 0
      %p147 = por %p145, %p146
      %p148 = scmp.ne.s32.totalorder %s136, %s137
      %p149 = scmp.eq.s32.totalorder %s22, 1
      %p150 = por %p148, %p149
      %p152 = scmp.ne.s32.totalorder %s137, %s151
      %p153 = scmp.eq.s32.totalorder %s22, 0
      %p154 = por %p152, %p153
      %s156 = sadd.s32 %s155, 1
      %p159 = scmp.eq.s32.totalorder %s16, 1
      %p160 = scmp.ne.s32.totalorder %s155, %s157
      %p161 = scmp.eq.s32.totalorder %s16, 0
      %p162 = por %p160, %p161
      %p163 = scmp.ne.s32.totalorder %s155, %s157
      %p164 = scmp.eq.s32.totalorder %s21, 1
      %p165 = por %p163, %p164
      %p166 = scmp.ne.s32.totalorder %s157, %s158
      %p167 = scmp.eq.s32.totalorder %s21, 0
      %p168 = por %p166, %p167
      %p169 = scmp.ne.s32.totalorder %s157, %s158
      %p170 = scmp.eq.s32.totalorder %s22, 1
      %p171 = por %p169, %p170
      %p173 = scmp.ne.s32.totalorder %s158, %s172
      %p174 = scmp.eq.s32.totalorder %s22, 0
      %p175 = por %p173, %p174
      %s176 = ssub.s32 %s16, %s23
      %p177 = scmp.eq.s32.totalorder %s176, 0
      %s179 = sadd.s32 %s178, 1
      %s180 = scalar_select %p177, %s178, %s179
      %p183 = pneg %p177
      %p184 = scmp.eq.s32.totalorder %s16, 1
      %p185 = por %p183, %p184
      %p186 = scmp.ne.s32.totalorder %s178, %s181
      %p187 = scmp.eq.s32.totalorder %s16, 0
      %p188 = por %p186, %p187
      %p189 = scmp.ne.s32.totalorder %s178, %s181
      %p190 = scmp.eq.s32.totalorder %s21, 1
      %p191 = por %p189, %p190
      %p192 = scmp.ne.s32.totalorder %s181, %s182
      %p193 = scmp.eq.s32.totalorder %s21, 0
      %p194 = por %p192, %p193
      %p195 = scmp.ne.s32.totalorder %s181, %s182
      %p196 = scmp.eq.s32.totalorder %s22, 1
      %p197 = por %p195, %p196
      %p199 = scmp.ne.s32.totalorder %s182, %s198
      %p200 = scmp.eq.s32.totalorder %s22, 0
      %p201 = por %p199, %p200
      %p202 = scmp.le.s32.totalorder 1, %s16
      %p203 = scmp.lt.s32.totalorder %s16, 3
      %p204 = pnand %p202, %p203
      %p205 = pneg %p204
      // Predicated region
      $region9: #{tpu_custom_call.1} parent=5 // pred_check
        _
      $region10: #{tpu_custom_call.1} parent=5 // pred_check_branch
        %207 = sbr.rel (%p204) target = $region12
      $region11: #{tpu_custom_call.1} parent=5 // pred_region
        %s208 = ssub.s32 %s16, 1
        // Predicated region
        $region13: #{tpu_custom_call.1} parent=11 // pred_check
          %p209 = pneg %p63
        $region14: #{tpu_custom_call.1} parent=11 // pred_check_branch
          %211 = sbr.rel (%p209) target = $region16
        $region15: #{tpu_custom_call.1} parent=11 // pred_region
          _
        $region16: #{tpu_custom_call.1} parent=11 // pred_fallthru
          _
        // Predicated region
        $region17: #{tpu_custom_call.1} parent=11 // pred_check
          %p212 = pneg %p84
        $region18: #{tpu_custom_call.1} parent=11 // pred_check_branch
          %214 = sbr.rel (%p212) target = $region20
        $region19: #{tpu_custom_call.1} parent=11 // pred_region
          _
        $region20: #{tpu_custom_call.1} parent=11 // pred_fallthru
          _
        // Predicated region
        $region21: #{tpu_custom_call.1} parent=11 // pred_check
          %p215 = pneg %p105
        $region22: #{tpu_custom_call.1} parent=11 // pred_check_branch
          %217 = sbr.rel (%p215) target = $region24
        $region23: #{tpu_custom_call.1} parent=11 // pred_region
          _
        $region24: #{tpu_custom_call.1} parent=11 // pred_fallthru
          _
        // Predicated region
        $region25: #{tpu_custom_call.1} parent=11 // pred_check
          %p218 = pneg %p126
        $region26: #{tpu_custom_call.1} parent=11 // pred_check_branch
          %220 = sbr.rel (%p218) target = $region28
        $region27: #{tpu_custom_call.1} parent=11 // pred_region
          _
        $region28: #{tpu_custom_call.1} parent=11 // pred_fallthru
          _
        // Predicated region
        $region29: #{tpu_custom_call.1} parent=11 // pred_check
          %p221 = pneg %p147
        $region30: #{tpu_custom_call.1} parent=11 // pred_check_branch
          %223 = sbr.rel (%p221) target = $region32
        $region31: #{tpu_custom_call.1} parent=11 // pred_region
          _
        $region32: #{tpu_custom_call.1} parent=11 // pred_fallthru
          _
        // Predicated region
        $region33: #{tpu_custom_call.1} parent=11 // pred_check
          %p224 = pneg %p168
        $region34: #{tpu_custom_call.1} parent=11 // pred_check_branch
          %226 = sbr.rel (%p224) target = $region36
        $region35: #{tpu_custom_call.1} parent=11 // pred_region
          _
        $region36: #{tpu_custom_call.1} parent=11 // pred_fallthru
          _
      $region12: #{tpu_custom_call.1} parent=5 // pred_fallthru
        _
      %p227 = scmp.lt.s32.totalorder %s16, 2
      // Predicated region
      $region37: #{tpu_custom_call.1} parent=5 // pred_check
        %p228 = pneg %p227
      $region38: #{tpu_custom_call.1} parent=5 // pred_check_branch
        %230 = sbr.rel (%p228) target = $region40
      $region39: #{tpu_custom_call.1} parent=5 // pred_region
        // Predicated region
        $region41: #{tpu_custom_call.1} parent=39 // pred_check
          %p231 = pneg %p36
        $region42: #{tpu_custom_call.1} parent=39 // pred_check_branch
          %233 = sbr.rel (%p231) target = $region44
        $region43: #{tpu_custom_call.1} parent=39 // pred_region
          %s234 = smul.u32 2, %s16
          %p235 = scmp.lt.s32.totalorder %s234, 3
          %s236 = scalar_select %p235, %s234, 3
          %s237 = smul.addr %s236, 4
          %s238 = scalar_lea.vmem %s0, %s237
          %s239 = smul.u32 2, %s16
        $region44: #{tpu_custom_call.1} parent=39 // pred_fallthru
          _
      $region40: #{tpu_custom_call.1} parent=5 // pred_fallthru
        _
      %p240 = scmp.le.s32.totalorder 1, %s16
      %p241 = scmp.lt.s32.totalorder %s16, 3
      %p242 = pnand %p240, %p241
      %p243 = pneg %p242
      // Predicated region
      $region45: #{tpu_custom_call.1} parent=5 // pred_check
        _
      $region46: #{tpu_custom_call.1} parent=5 // pred_check_branch
        %245 = sbr.rel (%p242) target = $region48
      $region47: #{tpu_custom_call.1} parent=5 // pred_region
        %s246 = ssub.s32 %s16, 1
        %s247 = smul.u32 2, %s21
        %p248 = scmp.lt.s32.totalorder %s247, 3
        %s249 = scalar_select %p248, %s247, 3
        %s250 = smul.addr %s249, 4
        %s251 = scalar_lea.vmem %s0, %s250
        %p252 = pneg %p42
        %p253 = pneg %p39
        %p254 = pneg %p63
        %p255 = pneg %p60
        %p256 = pneg %p84
        %p257 = pneg %p81
        %p258 = pneg %p105
        %p259 = pneg %p102
        %p260 = pneg %p126
        %p261 = pneg %p123
        %p262 = pneg %p147
        %p263 = pneg %p144
        %p264 = pneg %p168
        %p265 = pneg %p165
        %p266 = pneg %p194
        %p267 = pneg %p191
        %s268 = sand.u32 %s181, 1
        %s269 = scalar_lea.sflag [#allocation3], %s268
        %s270 = sand.u32 %s181, 1
        %s271 = smul.addr %s270, 16
        %s272 = scalar_lea.vmem [#allocation2], %s271
        %s273 = smul.u32 2, %s21
        %p274 = scmp.lt.s32.totalorder %s273, 3
        %s275 = scalar_select %p274, %s273, 3
        %s276 = smul.addr %s275, 4
        %s277 = scalar_lea.vmem %s0, %s276
        %s278 = smul.u32 2, %s21
        %s279 = smul.u32 2, %s21
        %v280 = vld [vmem:[%s277] sm:$0xff]
        %v281 = vlaneseq
        %v282 = vand.u32 %v281, 127
        %v283 = vadd.s32 %v282, 128
        %vm284 = vcmp.lt.s32.totalorder %v282, 0
        %v285 = vsub.s32 0, %v282
        %v286 = vsel %vm284, %v285, %v282
        %v287 = vshrl.u32 %v286, 7
        %v288 = vand.u32 %v286, 127
        %v289 = vsub.s32 0, %v288
        %v290 = vsel %vm284, %v289, %v288
        %vm291 = vcmp.lt.s32.totalorder %v283, 0
        %v292 = vsub.s32 0, %v283
        %v293 = vsel %vm291, %v292, %v283
        %v294 = vshrl.u32 %v293, 7
        %v295 = vand.u32 %v293, 127
        %v296 = vsub.s32 0, %v295
        %v297 = vsel %vm291, %v296, %v295
        %vm298 = vcmp.ne.s32.totalorder %v290, 0
        %vm299 = vcmp.ne.s32.totalorder %v297, 0
        %vm300 = vcmp.lt.s32.totalorder %v290, 0
        %vm301 = vcmp.lt.s32.totalorder %v297, 0
        %vm302 = vmand %vm300, %vm298
        %vm303 = vmand %vm301, %vm299
        %v304 = vadd.s32 %v290, 128
        %v305 = vadd.s32 %v297, 128
        %v306 = vsel %vm302, %v304, %v290
        %v307 = vsel %vm303, %v305, %v297
        %vm308 = vcmp.ge.s32.totalorder %v306, 2
        %vm309 = vcmp.ge.s32.totalorder %v307, 2
        %vm310 = vcmp.ge.s32.totalorder %v306, 4
        %vm311 = vcmp.ge.s32.totalorder %v307, 4
        %v312 = vld [vmem:[%s1] sm:$0xff]
        %v314 = vcombine.high %v280, %v280
        %316 = vrot.lane.b32.xlu0 %v280, 4
        %v317 = vpop.permute.xlu0 %316
        %318 = vrot.lane.b32.xlu0 %v314, 4
        %v319 = vpop.permute.xlu0 %318
        %vm320 = vcmp.lt.s32.totalorder %v282, 4
        %v321 = vsel %vm320, %v317, %v319
        %v322 = vsel %vm320, %v319, %v317
        %v323 = vsel %vm310, 1, 0
        %v324 = vsel %vm311, 1, 0
        %vm325 = vcmp.eq.s32.totalorder %v323, 1
        %vm326 = vcmp.eq.s32.totalorder %v324, 1
        %v327 = vsel %vm325, %v322, 0.0
        %v328 = vsel %vm326, %v321, 0.0
        %s329 = scalar_lea.vmem %s1, 8
        %v330 = vld [vmem:[%s329] sm:$0xff]
        %331 = vrot.lane.b32.xlu0 %v280, 2
        %v332 = vpop.permute.xlu0 %331
        %333 = vrot.lane.b32.xlu0 %v314, 2
        %v334 = vpop.permute.xlu0 %333
        %vm335 = vcmp.lt.s32.totalorder %v282, 2
        %v336 = vsel %vm335, %v332, %v334
        %v337 = vsel %vm335, %v334, %v332
        %v338 = vsel %vm308, 1, 0
        %v339 = vsel %vm309, 1, 0
        %vm340 = vcmp.eq.s32.totalorder %v338, 1
        %vm341 = vcmp.eq.s32.totalorder %v339, 1
        %v342 = vsel %vm340, %v337, 0.0
        %v343 = vsel %vm341, %v336, 0.0
        %vm344 = vcmask 31744
        %v346 = vsel %vm344, %v330, 0
        %vm348 = vcmask 1043456
        %v350 = vsel %vm348, %v342, 0
        %v353 = vsel %vm348, %v343, 0
        %355 = vmatprep.subr.mxu0 %v353
        %356 = vmatpush1.msra.mxu0 %v350
        %357 = vmatprep.subr.mxu0 0.0
        %358 = vmatpush1.msra.mxu0 0.0
        %359 = vmatprep.subr.mxu0 0.0
        %360 = vmatpush1.msra.mxu0 0.0
        %361 = vmatprep.subr.mxu0 0.0
        %362 = vmatpush1.msra.mxu0 0.0
        %363 = vmatprep.subr.mxu0 0.0
        %364 = vmatpush1.msra.mxu0 0.0
        %365 = vmatprep.subr.mxu0 0.0
        %366 = vmatpush1.msra.mxu0 0.0
        %367 = vmatprep.subr.mxu0 0.0
        %368 = vmatpush1.msra.mxu0 0.0
        %369 = vmatprep.subr.mxu0 0.0
        %370 = vmatpush1.msra.mxu0 0.0
        %371 = vmatprep.subr.mxu0 0.0
        %372 = vmatpush1.msra.mxu0 0.0
        %373 = vmatprep.subr.mxu0 0.0
        %374 = vmatpush1.msra.mxu0 0.0
        %375 = vmatprep.subr.mxu0 0.0
        %376 = vmatpush1.msra.mxu0 0.0
        %377 = vmatprep.subr.mxu0 0.0
        %378 = vmatpush1.msra.mxu0 0.0
        %379 = vmatprep.subr.mxu0 0.0
        %380 = vmatpush1.msra.mxu0 0.0
        %381 = vmatprep.subr.mxu0 0.0
        %382 = vmatpush1.msra.mxu0 0.0
        %383 = vmatprep.subr.mxu0 0.0
        %384 = vmatpush1.msra.mxu0 0.0
        %385 = vmatprep.subr.mxu0 0.0
        %386 = vmatpush1.msra.mxu0 0.0
        %387 = vmatprep.subr.mxu0 0.0
        %388 = vmatpush1.msra.mxu0 0.0
        %389 = vmatprep.subr.mxu0 0.0
        %390 = vmatpush1.msra.mxu0 0.0
        %391 = vmatprep.subr.mxu0 0.0
        %392 = vmatpush1.msra.mxu0 0.0
        %393 = vmatprep.subr.mxu0 0.0
        %394 = vmatpush1.msra.mxu0 0.0
        %395 = vmatprep.subr.mxu0 0.0
        %396 = vmatpush1.msra.mxu0 0.0
        %397 = vmatprep.subr.mxu0 0.0
        %398 = vmatpush1.msra.mxu0 0.0
        %399 = vmatprep.subr.mxu0 0.0
        %400 = vmatpush1.msra.mxu0 0.0
        %401 = vmatprep.subr.mxu0 0.0
        %402 = vmatpush1.msra.mxu0 0.0
        %403 = vmatprep.subr.mxu0 0.0
        %404 = vmatpush1.msra.mxu0 0.0
        %405 = vmatprep.subr.mxu0 0.0
        %406 = vmatpush1.msra.mxu0 0.0
        %407 = vmatprep.subr.mxu0 0.0
        %408 = vmatpush1.msra.mxu0 0.0
        %409 = vmatprep.subr.mxu0 0.0
        %410 = vmatpush1.msra.mxu0 0.0
        %411 = vmatprep.subr.mxu0 0.0
        %412 = vmatpush1.msra.mxu0 0.0
        %413 = vmatprep.subr.mxu0 0.0
        %414 = vmatpush1.msra.mxu0 0.0
        %415 = vmatprep.subr.mxu0 0.0
        %416 = vmatpush1.msra.mxu0 0.0
        %417 = vmatprep.subr.mxu0 0.0
        %418 = vmatpush1.msra.mxu0 0.0
        %419 = vmatprep.mubr.f32.mxu0 0.0
        %420 = vmatmul.mubr.f32.gmra.mrb[0].mxu0 %v346
        %v421 = vpop.f32.mrb[0].mxu0
        %v422 = vadd.f32 0.0, %v421
        %v423 = vpop.f32.mrb[0].mxu0
        %v424 = vadd.f32 0.0, %v423
        %425 = vdwg.mxu0
        %v427 = vsel %vm344, %v312, 0
        %v430 = vsel %vm348, %v327, 0
        %v433 = vsel %vm348, %v328, 0
        %435 = vmatprep.subr.mxu0 %v433
        %436 = vmatpush1.msra.mxu0 %v430
        %437 = vmatprep.subr.mxu0 0.0
        %438 = vmatpush1.msra.mxu0 0.0
        %439 = vmatprep.subr.mxu0 0.0
        %440 = vmatpush1.msra.mxu0 0.0
        %441 = vmatprep.subr.mxu0 0.0
        %442 = vmatpush1.msra.mxu0 0.0
        %443 = vmatprep.subr.mxu0 0.0
        %444 = vmatpush1.msra.mxu0 0.0
        %445 = vmatprep.subr.mxu0 0.0
        %446 = vmatpush1.msra.mxu0 0.0
        %447 = vmatprep.subr.mxu0 0.0
        %448 = vmatpush1.msra.mxu0 0.0
        %449 = vmatprep.subr.mxu0 0.0
        %450 = vmatpush1.msra.mxu0 0.0
        %451 = vmatprep.subr.mxu0 0.0
        %452 = vmatpush1.msra.mxu0 0.0
        %453 = vmatprep.subr.mxu0 0.0
        %454 = vmatpush1.msra.mxu0 0.0
        %455 = vmatprep.subr.mxu0 0.0
        %456 = vmatpush1.msra.mxu0 0.0
        %457 = vmatprep.subr.mxu0 0.0
        %458 = vmatpush1.msra.mxu0 0.0
        %459 = vmatprep.subr.mxu0 0.0
        %460 = vmatpush1.msra.mxu0 0.0
        %461 = vmatprep.subr.mxu0 0.0
        %462 = vmatpush1.msra.mxu0 0.0
        %463 = vmatprep.subr.mxu0 0.0
        %464 = vmatpush1.msra.mxu0 0.0
        %465 = vmatprep.subr.mxu0 0.0
        %466 = vmatpush1.msra.mxu0 0.0
        %467 = vmatprep.subr.mxu0 0.0
        %468 = vmatpush1.msra.mxu0 0.0
        %469 = vmatprep.subr.mxu0 0.0
        %470 = vmatpush1.msra.mxu0 0.0
        %471 = vmatprep.subr.mxu0 0.0
        %472 = vmatpush1.msra.mxu0 0.0
        %473 = vmatprep.subr.mxu0 0.0
        %474 = vmatpush1.msra.mxu0 0.0
        %475 = vmatprep.subr.mxu0 0.0
        %476 = vmatpush1.msra.mxu0 0.0
        %477 = vmatprep.subr.mxu0 0.0
        %478 = vmatpush1.msra.mxu0 0.0
        %479 = vmatprep.subr.mxu0 0.0
        %480 = vmatpush1.msra.mxu0 0.0
        %481 = vmatprep.subr.mxu0 0.0
        %482 = vmatpush1.msra.mxu0 0.0
        %483 = vmatprep.subr.mxu0 0.0
        %484 = vmatpush1.msra.mxu0 0.0
        %485 = vmatprep.subr.mxu0 0.0
        %486 = vmatpush1.msra.mxu0 0.0
        %487 = vmatprep.subr.mxu0 0.0
        %488 = vmatpush1.msra.mxu0 0.0
        %489 = vmatprep.subr.mxu0 0.0
        %490 = vmatpush1.msra.mxu0 0.0
        %491 = vmatprep.subr.mxu0 0.0
        %492 = vmatpush1.msra.mxu0 0.0
        %493 = vmatprep.subr.mxu0 0.0
        %494 = vmatpush1.msra.mxu0 0.0
        %495 = vmatprep.subr.mxu0 0.0
        %496 = vmatpush1.msra.mxu0 0.0
        %497 = vmatprep.subr.mxu0 0.0
        %498 = vmatpush1.msra.mxu0 0.0
        %499 = vmatprep.mubr.f32.mxu0 0.0
        %500 = vmatmul.mubr.f32.gmra.mrb[0].mxu0 %v427
        %v501 = vpop.f32.mrb[0].mxu0
        %v502 = vadd.f32 %v422, %v501
        %v503 = vpop.f32.mrb[0].mxu0
        %v504 = vadd.f32 %v424, %v503
        %505 = vdwg.mxu0
        %s506 = scalar_lea.vmem %s1, 16
        %v507 = vld [vmem:[%s506] sm:$0xff]
        %v509 = vsel %vm344, %v507, 0
        %v511 = vsel %vm348, %v280, 0
        %v513 = vsel %vm348, %v314, 0
        %515 = vmatprep.subr.mxu0 %v513
        %516 = vmatpush1.msra.mxu0 %v511
        %517 = vmatprep.subr.mxu0 0.0
        %518 = vmatpush1.msra.mxu0 0.0
        %519 = vmatprep.subr.mxu0 0.0
        %520 = vmatpush1.msra.mxu0 0.0
        %521 = vmatprep.subr.mxu0 0.0
        %522 = vmatpush1.msra.mxu0 0.0
        %523 = vmatprep.subr.mxu0 0.0
        %524 = vmatpush1.msra.mxu0 0.0
        %525 = vmatprep.subr.mxu0 0.0
        %526 = vmatpush1.msra.mxu0 0.0
        %527 = vmatprep.subr.mxu0 0.0
        %528 = vmatpush1.msra.mxu0 0.0
        %529 = vmatprep.subr.mxu0 0.0
        %530 = vmatpush1.msra.mxu0 0.0
        %531 = vmatprep.subr.mxu0 0.0
        %532 = vmatpush1.msra.mxu0 0.0
        %533 = vmatprep.subr.mxu0 0.0
        %534 = vmatpush1.msra.mxu0 0.0
        %535 = vmatprep.subr.mxu0 0.0
        %536 = vmatpush1.msra.mxu0 0.0
        %537 = vmatprep.subr.mxu0 0.0
        %538 = vmatpush1.msra.mxu0 0.0
        %539 = vmatprep.subr.mxu0 0.0
        %540 = vmatpush1.msra.mxu0 0.0
        %541 = vmatprep.subr.mxu0 0.0
        %542 = vmatpush1.msra.mxu0 0.0
        %543 = vmatprep.subr.mxu0 0.0
        %544 = vmatpush1.msra.mxu0 0.0
        %545 = vmatprep.subr.mxu0 0.0
        %546 = vmatpush1.msra.mxu0 0.0
        %547 = vmatprep.subr.mxu0 0.0
        %548 = vmatpush1.msra.mxu0 0.0
        %549 = vmatprep.subr.mxu0 0.0
        %550 = vmatpush1.msra.mxu0 0.0
        %551 = vmatprep.subr.mxu0 0.0
        %552 = vmatpush1.msra.mxu0 0.0
        %553 = vmatprep.subr.mxu0 0.0
        %554 = vmatpush1.msra.mxu0 0.0
        %555 = vmatprep.subr.mxu0 0.0
        %556 = vmatpush1.msra.mxu0 0.0
        %557 = vmatprep.subr.mxu0 0.0
        %558 = vmatpush1.msra.mxu0 0.0
        %559 = vmatprep.subr.mxu0 0.0
        %560 = vmatpush1.msra.mxu0 0.0
        %561 = vmatprep.subr.mxu0 0.0
        %562 = vmatpush1.msra.mxu0 0.0
        %563 = vmatprep.subr.mxu0 0.0
        %564 = vmatpush1.msra.mxu0 0.0
        %565 = vmatprep.subr.mxu0 0.0
        %566 = vmatpush1.msra.mxu0 0.0
        %567 = vmatprep.subr.mxu0 0.0
        %568 = vmatpush1.msra.mxu0 0.0
        %569 = vmatprep.subr.mxu0 0.0
        %570 = vmatpush1.msra.mxu0 0.0
        %571 = vmatprep.subr.mxu0 0.0
        %572 = vmatpush1.msra.mxu0 0.0
        %573 = vmatprep.subr.mxu0 0.0
        %574 = vmatpush1.msra.mxu0 0.0
        %575 = vmatprep.subr.mxu0 0.0
        %576 = vmatpush1.msra.mxu0 0.0
        %577 = vmatprep.subr.mxu0 0.0
        %578 = vmatpush1.msra.mxu0 0.0
        %579 = vmatprep.mubr.f32.mxu0 0.0
        %580 = vmatmul.mubr.f32.gmra.mrb[0].mxu0 %v509
        %v581 = vpop.f32.mrb[0].mxu0
        %v582 = vadd.f32 0.0, %v581
        %v583 = vpop.f32.mrb[0].mxu0
        %v584 = vadd.f32 0.0, %v583
        %585 = vdwg.mxu0
        %v586 = vadd.f32 %v502, %v582
        %v587 = vadd.f32 %v504, %v584
        %v588 = vld [vmem:[%s2] sm:$0xff]
        %590 = vset.pattern.permute.xlu0 0
        %591 = vperm.xlu0 %590, %v588
        %v592 = vpop.permute.xlu0 %591
        %v594 = vadd.f32 %v586, %v592
        %v595 = vadd.f32 %v587, %v592
        %v596 = vmax.f32 %v594, 0.0
        %v597 = vmax.f32 %v595, 0.0
        %v598 = vld [vmem:[%s3] sm:$0xff]
        %599 = vrot.lane.b32.xlu0 %v596, 4
        %v600 = vpop.permute.xlu0 %599
        %601 = vrot.lane.b32.xlu0 %v597, 4
        %v602 = vpop.permute.xlu0 %601
        %v603 = vsel %vm320, %v600, %v602
        %v604 = vsel %vm320, %v602, %v600
        %v605 = vsel %vm325, %v604, 0.0
        %v606 = vsel %vm326, %v603, 0.0
        %s607 = scalar_lea.vmem %s3, 8
        %v608 = vld [vmem:[%s607] sm:$0xff]
        %609 = vrot.lane.b32.xlu0 %v596, 2
        %v610 = vpop.permute.xlu0 %609
        %611 = vrot.lane.b32.xlu0 %v597, 2
        %v612 = vpop.permute.xlu0 %611
        %v613 = vsel %vm335, %v610, %v612
        %v614 = vsel %vm335, %v612, %v610
        %v615 = vsel %vm340, %v614, 0.0
        %v616 = vsel %vm341, %v613, 0.0
        %vm617 = vcmask 64512
        %v619 = vsel %vm617, %v608, 0
        %621 = vmatprep.subr.mxu0 %v616
        %622 = vmatpush1.msra.mxu0 %v615
        %623 = vmatprep.subr.mxu0 0.0
        %624 = vmatpush1.msra.mxu0 0.0
        %625 = vmatprep.subr.mxu0 0.0
        %626 = vmatpush1.msra.mxu0 0.0
        %627 = vmatprep.subr.mxu0 0.0
        %628 = vmatpush1.msra.mxu0 0.0
        %629 = vmatprep.subr.mxu0 0.0
        %630 = vmatpush1.msra.mxu0 0.0
        %631 = vmatprep.subr.mxu0 0.0
        %632 = vmatpush1.msra.mxu0 0.0
        %633 = vmatprep.subr.mxu0 0.0
        %634 = vmatpush1.msra.mxu0 0.0
        %635 = vmatprep.subr.mxu0 0.0
        %636 = vmatpush1.msra.mxu0 0.0
        %637 = vmatprep.subr.mxu0 0.0
        %638 = vmatpush1.msra.mxu0 0.0
        %639 = vmatprep.subr.mxu0 0.0
        %640 = vmatpush1.msra.mxu0 0.0
        %641 = vmatprep.subr.mxu0 0.0
        %642 = vmatpush1.msra.mxu0 0.0
        %643 = vmatprep.subr.mxu0 0.0
        %644 = vmatpush1.msra.mxu0 0.0
        %645 = vmatprep.subr.mxu0 0.0
        %646 = vmatpush1.msra.mxu0 0.0
        %647 = vmatprep.subr.mxu0 0.0
        %648 = vmatpush1.msra.mxu0 0.0
        %649 = vmatprep.subr.mxu0 0.0
        %650 = vmatpush1.msra.mxu0 0.0
        %651 = vmatprep.subr.mxu0 0.0
        %652 = vmatpush1.msra.mxu0 0.0
        %653 = vmatprep.subr.mxu0 0.0
        %654 = vmatpush1.msra.mxu0 0.0
        %655 = vmatprep.subr.mxu0 0.0
        %656 = vmatpush1.msra.mxu0 0.0
        %657 = vmatprep.subr.mxu0 0.0
        %658 = vmatpush1.msra.mxu0 0.0
        %659 = vmatprep.subr.mxu0 0.0
        %660 = vmatpush1.msra.mxu0 0.0
        %661 = vmatprep.subr.mxu0 0.0
        %662 = vmatpush1.msra.mxu0 0.0
        %663 = vmatprep.subr.mxu0 0.0
        %664 = vmatpush1.msra.mxu0 0.0
        %665 = vmatprep.subr.mxu0 0.0
        %666 = vmatpush1.msra.mxu0 0.0
        %667 = vmatprep.subr.mxu0 0.0
        %668 = vmatpush1.msra.mxu0 0.0
        %669 = vmatprep.subr.mxu0 0.0
        %670 = vmatpush1.msra.mxu0 0.0
        %671 = vmatprep.subr.mxu0 0.0
        %672 = vmatpush1.msra.mxu0 0.0
        %673 = vmatprep.subr.mxu0 0.0
        %674 = vmatpush1.msra.mxu0 0.0
        %675 = vmatprep.subr.mxu0 0.0
        %676 = vmatpush1.msra.mxu0 0.0
        %677 = vmatprep.subr.mxu0 0.0
        %678 = vmatpush1.msra.mxu0 0.0
        %679 = vmatprep.subr.mxu0 0.0
        %680 = vmatpush1.msra.mxu0 0.0
        %681 = vmatprep.subr.mxu0 0.0
        %682 = vmatpush1.msra.mxu0 0.0
        %683 = vmatprep.subr.mxu0 0.0
        %684 = vmatpush1.msra.mxu0 0.0
        %685 = vmatprep.mubr.f32.mxu0 0.0
        %686 = vmatmul.mubr.f32.gmra.mrb[0].mxu0 %v619
        %v687 = vpop.f32.mrb[0].mxu0
        %v688 = vadd.f32 0.0, %v687
        %v689 = vpop.f32.mrb[0].mxu0
        %v690 = vadd.f32 0.0, %v689
        %691 = vdwg.mxu0
        %v693 = vsel %vm617, %v598, 0
        %695 = vmatprep.subr.mxu0 %v606
        %696 = vmatpush1.msra.mxu0 %v605
        %697 = vmatprep.subr.mxu0 0.0
        %698 = vmatpush1.msra.mxu0 0.0
        %699 = vmatprep.subr.mxu0 0.0
        %700 = vmatpush1.msra.mxu0 0.0
        %701 = vmatprep.subr.mxu0 0.0
        %702 = vmatpush1.msra.mxu0 0.0
        %703 = vmatprep.subr.mxu0 0.0
        %704 = vmatpush1.msra.mxu0 0.0
        %705 = vmatprep.subr.mxu0 0.0
        %706 = vmatpush1.msra.mxu0 0.0
        %707 = vmatprep.subr.mxu0 0.0
        %708 = vmatpush1.msra.mxu0 0.0
        %709 = vmatprep.subr.mxu0 0.0
        %710 = vmatpush1.msra.mxu0 0.0
        %711 = vmatprep.subr.mxu0 0.0
        %712 = vmatpush1.msra.mxu0 0.0
        %713 = vmatprep.subr.mxu0 0.0
        %714 = vmatpush1.msra.mxu0 0.0
        %715 = vmatprep.subr.mxu0 0.0
        %716 = vmatpush1.msra.mxu0 0.0
        %717 = vmatprep.subr.mxu0 0.0
        %718 = vmatpush1.msra.mxu0 0.0
        %719 = vmatprep.subr.mxu0 0.0
        %720 = vmatpush1.msra.mxu0 0.0
        %721 = vmatprep.subr.mxu0 0.0
        %722 = vmatpush1.msra.mxu0 0.0
        %723 = vmatprep.subr.mxu0 0.0
        %724 = vmatpush1.msra.mxu0 0.0
        %725 = vmatprep.subr.mxu0 0.0
        %726 = vmatpush1.msra.mxu0 0.0
        %727 = vmatprep.subr.mxu0 0.0
        %728 = vmatpush1.msra.mxu0 0.0
        %729 = vmatprep.subr.mxu0 0.0
        %730 = vmatpush1.msra.mxu0 0.0
        %731 = vmatprep.subr.mxu0 0.0
        %732 = vmatpush1.msra.mxu0 0.0
        %733 = vmatprep.subr.mxu0 0.0
        %734 = vmatpush1.msra.mxu0 0.0
        %735 = vmatprep.subr.mxu0 0.0
        %736 = vmatpush1.msra.mxu0 0.0
        %737 = vmatprep.subr.mxu0 0.0
        %738 = vmatpush1.msra.mxu0 0.0
        %739 = vmatprep.subr.mxu0 0.0
        %740 = vmatpush1.msra.mxu0 0.0
        %741 = vmatprep.subr.mxu0 0.0
        %742 = vmatpush1.msra.mxu0 0.0
        %743 = vmatprep.subr.mxu0 0.0
        %744 = vmatpush1.msra.mxu0 0.0
        %745 = vmatprep.subr.mxu0 0.0
        %746 = vmatpush1.msra.mxu0 0.0
        %747 = vmatprep.subr.mxu0 0.0
        %748 = vmatpush1.msra.mxu0 0.0
        %749 = vmatprep.subr.mxu0 0.0
        %750 = vmatpush1.msra.mxu0 0.0
        %751 = vmatprep.subr.mxu0 0.0
        %752 = vmatpush1.msra.mxu0 0.0
        %753 = vmatprep.subr.mxu0 0.0
        %754 = vmatpush1.msra.mxu0 0.0
        %755 = vmatprep.subr.mxu0 0.0
        %756 = vmatpush1.msra.mxu0 0.0
        %757 = vmatprep.subr.mxu0 0.0
        %758 = vmatpush1.msra.mxu0 0.0
        %759 = vmatprep.mubr.f32.mxu0 0.0
        %760 = vmatmul.mubr.f32.gmra.mrb[0].mxu0 %v693
        %v761 = vpop.f32.mrb[0].mxu0
        %v762 = vadd.f32 %v688, %v761
        %v763 = vpop.f32.mrb[0].mxu0
        %v764 = vadd.f32 %v690, %v763
        %765 = vdwg.mxu0
        %s766 = scalar_lea.vmem %s3, 16
        %v767 = vld [vmem:[%s766] sm:$0xff]
        %v769 = vsel %vm617, %v767, 0
        %771 = vmatprep.subr.mxu0 %v597
        %772 = vmatpush1.msra.mxu0 %v596
        %773 = vmatprep.subr.mxu0 0.0
        %774 = vmatpush1.msra.mxu0 0.0
        %775 = vmatprep.subr.mxu0 0.0
        %776 = vmatpush1.msra.mxu0 0.0
        %777 = vmatprep.subr.mxu0 0.0
        %778 = vmatpush1.msra.mxu0 0.0
        %779 = vmatprep.subr.mxu0 0.0
        %780 = vmatpush1.msra.mxu0 0.0
        %781 = vmatprep.subr.mxu0 0.0
        %782 = vmatpush1.msra.mxu0 0.0
        %783 = vmatprep.subr.mxu0 0.0
        %784 = vmatpush1.msra.mxu0 0.0
        %785 = vmatprep.subr.mxu0 0.0
        %786 = vmatpush1.msra.mxu0 0.0
        %787 = vmatprep.subr.mxu0 0.0
        %788 = vmatpush1.msra.mxu0 0.0
        %789 = vmatprep.subr.mxu0 0.0
        %790 = vmatpush1.msra.mxu0 0.0
        %791 = vmatprep.subr.mxu0 0.0
        %792 = vmatpush1.msra.mxu0 0.0
        %793 = vmatprep.subr.mxu0 0.0
        %794 = vmatpush1.msra.mxu0 0.0
        %795 = vmatprep.subr.mxu0 0.0
        %796 = vmatpush1.msra.mxu0 0.0
        %797 = vmatprep.subr.mxu0 0.0
        %798 = vmatpush1.msra.mxu0 0.0
        %799 = vmatprep.subr.mxu0 0.0
        %800 = vmatpush1.msra.mxu0 0.0
        %801 = vmatprep.subr.mxu0 0.0
        %802 = vmatpush1.msra.mxu0 0.0
        %803 = vmatprep.subr.mxu0 0.0
        %804 = vmatpush1.msra.mxu0 0.0
        %805 = vmatprep.subr.mxu0 0.0
        %806 = vmatpush1.msra.mxu0 0.0
        %807 = vmatprep.subr.mxu0 0.0
        %808 = vmatpush1.msra.mxu0 0.0
        %809 = vmatprep.subr.mxu0 0.0
        %810 = vmatpush1.msra.mxu0 0.0
        %811 = vmatprep.subr.mxu0 0.0
        %812 = vmatpush1.msra.mxu0 0.0
        %813 = vmatprep.subr.mxu0 0.0
        %814 = vmatpush1.msra.mxu0 0.0
        %815 = vmatprep.subr.mxu0 0.0
        %816 = vmatpush1.msra.mxu0 0.0
        %817 = vmatprep.subr.mxu0 0.0
        %818 = vmatpush1.msra.mxu0 0.0
        %819 = vmatprep.subr.mxu0 0.0
        %820 = vmatpush1.msra.mxu0 0.0
        %821 = vmatprep.subr.mxu0 0.0
        %822 = vmatpush1.msra.mxu0 0.0
        %823 = vmatprep.subr.mxu0 0.0
        %824 = vmatpush1.msra.mxu0 0.0
        %825 = vmatprep.subr.mxu0 0.0
        %826 = vmatpush1.msra.mxu0 0.0
        %827 = vmatprep.subr.mxu0 0.0
        %828 = vmatpush1.msra.mxu0 0.0
        %829 = vmatprep.subr.mxu0 0.0
        %830 = vmatpush1.msra.mxu0 0.0
        %831 = vmatprep.subr.mxu0 0.0
        %832 = vmatpush1.msra.mxu0 0.0
        %833 = vmatprep.subr.mxu0 0.0
        %834 = vmatpush1.msra.mxu0 0.0
        %835 = vmatprep.mubr.f32.mxu0 0.0
        %836 = vmatmul.mubr.f32.gmra.mrb[0].mxu0 %v769
        %v837 = vpop.f32.mrb[0].mxu0
        %v838 = vadd.f32 0.0, %v837
        %v839 = vpop.f32.mrb[0].mxu0
        %v840 = vadd.f32 0.0, %v839
        %841 = vdwg.mxu0
        %v842 = vadd.f32 %v762, %v838
        %v843 = vadd.f32 %v764, %v840
        %v844 = vld [vmem:[%s4] sm:$0xff]
        %846 = vset.pattern.permute.xlu0 0
        %847 = vperm.xlu0 %846, %v844
        %v848 = vpop.permute.xlu0 %847
        %v850 = vadd.f32 %v842, %v848
        %v851 = vadd.f32 %v843, %v848
        %v852 = vmax.f32 %v850, 0.0
        %v853 = vmax.f32 %v851, 0.0
        %v854 = vld [vmem:[%s5] sm:$0xff]
        %v855 = vld [vmem:[%s6] sm:$0xff]
        %857 = vset.pattern.permute.xlu0 0
        %858 = vperm.xlu0 %857, %v855
        %v859 = vpop.permute.xlu0 %858
        %v862 = vsel %vm344, %v854, 0
        %864 = vmatprep.subr.mxu0 %v513
        %865 = vmatpush1.msra.mxu0 %v511
        %866 = vmatprep.subr.mxu0 0.0
        %867 = vmatpush1.msra.mxu0 0.0
        %868 = vmatprep.subr.mxu0 0.0
        %869 = vmatpush1.msra.mxu0 0.0
        %870 = vmatprep.subr.mxu0 0.0
        %871 = vmatpush1.msra.mxu0 0.0
        %872 = vmatprep.subr.mxu0 0.0
        %873 = vmatpush1.msra.mxu0 0.0
        %874 = vmatprep.subr.mxu0 0.0
        %875 = vmatpush1.msra.mxu0 0.0
        %876 = vmatprep.subr.mxu0 0.0
        %877 = vmatpush1.msra.mxu0 0.0
        %878 = vmatprep.subr.mxu0 0.0
        %879 = vmatpush1.msra.mxu0 0.0
        %880 = vmatprep.subr.mxu0 0.0
        %881 = vmatpush1.msra.mxu0 0.0
        %882 = vmatprep.subr.mxu0 0.0
        %883 = vmatpush1.msra.mxu0 0.0
        %884 = vmatprep.subr.mxu0 0.0
        %885 = vmatpush1.msra.mxu0 0.0
        %886 = vmatprep.subr.mxu0 0.0
        %887 = vmatpush1.msra.mxu0 0.0
        %888 = vmatprep.subr.mxu0 0.0
        %889 = vmatpush1.msra.mxu0 0.0
        %890 = vmatprep.subr.mxu0 0.0
        %891 = vmatpush1.msra.mxu0 0.0
        %892 = vmatprep.subr.mxu0 0.0
        %893 = vmatpush1.msra.mxu0 0.0
        %894 = vmatprep.subr.mxu0 0.0
        %895 = vmatpush1.msra.mxu0 0.0
        %896 = vmatprep.subr.mxu0 0.0
        %897 = vmatpush1.msra.mxu0 0.0
        %898 = vmatprep.subr.mxu0 0.0
        %899 = vmatpush1.msra.mxu0 0.0
        %900 = vmatprep.subr.mxu0 0.0
        %901 = vmatpush1.msra.mxu0 0.0
        %902 = vmatprep.subr.mxu0 0.0
        %903 = vmatpush1.msra.mxu0 0.0
        %904 = vmatprep.subr.mxu0 0.0
        %905 = vmatpush1.msra.mxu0 0.0
        %906 = vmatprep.subr.mxu0 0.0
        %907 = vmatpush1.msra.mxu0 0.0
        %908 = vmatprep.subr.mxu0 0.0
        %909 = vmatpush1.msra.mxu0 0.0
        %910 = vmatprep.subr.mxu0 0.0
        %911 = vmatpush1.msra.mxu0 0.0
        %912 = vmatprep.subr.mxu0 0.0
        %913 = vmatpush1.msra.mxu0 0.0
        %914 = vmatprep.subr.mxu0 0.0
        %915 = vmatpush1.msra.mxu0 0.0
        %916 = vmatprep.subr.mxu0 0.0
        %917 = vmatpush1.msra.mxu0 0.0
        %918 = vmatprep.subr.mxu0 0.0
        %919 = vmatpush1.msra.mxu0 0.0
        %920 = vmatprep.subr.mxu0 0.0
        %921 = vmatpush1.msra.mxu0 0.0
        %922 = vmatprep.subr.mxu0 0.0
        %923 = vmatpush1.msra.mxu0 0.0
        %924 = vmatprep.subr.mxu0 0.0
        %925 = vmatpush1.msra.mxu0 0.0
        %926 = vmatprep.subr.mxu0 0.0
        %927 = vmatpush1.msra.mxu0 0.0
        %928 = vmatprep.mubr.f32.mxu0 0.0
        %929 = vmatmul.mubr.f32.gmra.mrb[0].mxu0 %v862
        %v930 = vpop.f32.mrb[0].mxu0
        %v931 = vadd.f32 %v859, %v930
        %v932 = vpop.f32.mrb[0].mxu0
        %v933 = vadd.f32 %v859, %v932
        %934 = vdwg.mxu0
        %v935 = vadd.f32 %v852, %v931
        %v936 = vadd.f32 %v853, %v933
        %v937 = vmax.f32 %v935, 0.0
        %v938 = vmax.f32 %v936, 0.0
        %939 = vst [vmem:[%s272] sm:$0xff] %v937
        %940 = vst [vmem:[%s272 + $0x8] sm:$0xff] %v938
        %s941 = sand.u32 %s181, 1
        %s942 = scalar_lea.sflag [#allocation3], %s941
        %s943 = sand.u32 %s181, 1
        %s944 = smul.addr %s943, 16
        %s945 = scalar_lea.vmem [#allocation2], %s944
        // Predicated region
        $region49: #{tpu_custom_call.1} parent=47 // pred_check
          %p946 = pneg %p191
        $region50: #{tpu_custom_call.1} parent=47 // pred_check_branch
          %948 = sbr.rel (%p946) target = $region52
        $region51: #{tpu_custom_call.1} parent=47 // pred_region
          %s949 = smul.u32 2, %s21
          %s951 = ssub.s32 256, 256
          %952 = vsyncadd %s942, %s951
          %s953 = smul.addr %s949, 128
          %s954 = scalar_lea.hbm %s7, %s953
          %s956 = sshll.u32 %s945, 4
          %s957 = int_to_ptr.vmem [resolvable:$true] %s956
          %959 = dma.vmem_to_hbm [thread:$0]  %s957, 256, %s954, %s942
        $region52: #{tpu_custom_call.1} parent=47 // pred_fallthru
          _
      $region48: #{tpu_custom_call.1} parent=5 // pred_fallthru
        _
      %p960 = scmp.le.s32.totalorder 2, %s16
      // Predicated region
      $region53: #{tpu_custom_call.1} parent=5 // pred_check
        %p961 = pneg %p960
      $region54: #{tpu_custom_call.1} parent=5 // pred_check_branch
        %963 = sbr.rel (%p961) target = $region56
      $region55: #{tpu_custom_call.1} parent=5 // pred_region
        %s964 = ssub.s32 %s16, 2
        // Predicated region
        $region57: #{tpu_custom_call.1} parent=55 // pred_check
          %p965 = pneg %p197
        $region58: #{tpu_custom_call.1} parent=55 // pred_check_branch
          %967 = sbr.rel (%p965) target = $region60
        $region59: #{tpu_custom_call.1} parent=55 // pred_region
          %s968 = sand.u32 %s182, 1
          %s969 = scalar_lea.sflag [#allocation3], %s968
          %s970 = sand.u32 %s182, 1
          %s971 = smul.addr %s970, 16
          %s972 = scalar_lea.vmem [#allocation2], %s971
          %973 = dma.done %s969, 256
        $region60: #{tpu_custom_call.1} parent=55 // pred_fallthru
          _
      $region56: #{tpu_custom_call.1} parent=5 // pred_fallthru
        _
    $region6: #{tpu_custom_call.1} parent=1 // loop_footer
      %s20 = sadd.s32 1, %s16
    $region7: #{tpu_custom_call.1} parent=1 // loop_footer_branch
      %15 = sbr.rel target = $region3
    $region8: #{tpu_custom_call.1} parent=1 // loop_exit
      _
    %974 = vsyncpa [#allocation3], 1
    %s975 = scalar_lea.sflag [#allocation3], 1
    %976 = vsyncpa %s975, 1

</llo_original>
